<compile_context>
chip_gen: v5e
topology: v5e:2x2
jax: 0.10.0
libtpu: 0.0.40
codegen_flags: <defaults>
</compile_context>

<pallas_src>
import math

import jax
import jax.numpy as jnp
import numpy as np
from jax import lax
from jax.experimental import pallas as pl
from jax.experimental.pallas import tpu as pltpu

LN_EPS = 1e-5  # torch.nn.LayerNorm default


def _round_up(n, m):
    return ((n + m - 1) // m) * m


# ------------------------------- kernel --------------------------------------
def patch_embed_kernel(p_ref, w_ref, vec_ref, o_ref):
    p = p_ref[...]                       # (TM, K)  bf16 row tile (streamed)
    w = w_ref[...]                       # (K, E)   bf16 (resident)
    bias = vec_ref[0:1, :]               # (1, E)   f32
    gamma = vec_ref[1:2, :]              # (1, E)   f32
    beta = vec_ref[2:3, :]               # (1, E)   f32

    # Conv2d as im2col matmul: MXU consumes bf16, accumulates in f32.
    y = jnp.dot(p, w, preferred_element_type=jnp.float32) + bias    # (TM, E) f32

    # LayerNorm over the embedding dim (all f32).
    mu = jnp.mean(y, axis=-1, keepdims=True)
    var = jnp.mean((y - mu) ** 2, axis=-1, keepdims=True)
    y = (y - mu) * lax.rsqrt(var + LN_EPS) * gamma + beta

    o_ref[...] = y.astype(o_ref.dtype)


# ------------------------------- wrapper --------------------------------------
def overlap_patch_embed(x, w_conv, b_conv, gamma, beta, *, patch_size=7, stride=4):
    Bb, Cin, H, W = x.shape
    E = w_conv.shape[0]
    P, S = patch_size, stride
    pad = P // 2
    Ho = (H + 2 * pad - P) // S + 1
    Wo = (W + 2 * pad - P) // S + 1
    N = Ho * Wo
    K = Cin * P * P
    rows = Bb * N

    # --- patch extraction: single fused XLA op, channel-last output ----------
    # Feature ordering of the patches is (Cin, P, P) flattened, which matches
    # w_conv.reshape(E, K).  HIGHEST precision keeps the 0/1 selection exact.
    patches = lax.conv_general_dilated_patches(
        x, filter_shape=(P, P), window_strides=(S, S),
        padding=((pad, pad), (pad, pad)),
        dimension_numbers=("NCHW", "OIHW", "NHWC"),
        precision=lax.Precision.HIGHEST)                    # (B, Ho, Wo, K)
    patches = patches.reshape(rows, K).astype(jnp.bfloat16)  # (B*N, K) bf16

    # --- parameters: bf16 weight matrix + one (3, E) f32 bias/gamma/beta slab -
    w_mat = w_conv.reshape(E, K).T.astype(jnp.bfloat16)               # (K, E)
    vecs = jnp.stack([b_conv, gamma, beta], axis=0).astype(jnp.float32)  # (3, E)

    # --- row tiling over the fused (B*N) axis ---------------------------------
    TM = min(1024, _round_up(rows, 16))      # bf16 sublane pack = 16
    grid = (pl.cdiv(rows, TM),)

    out = pl.pallas_call(
        patch_embed_kernel,
        out_shape=jax.ShapeDtypeStruct((rows, E), jnp.float32),
        grid=grid,
        in_specs=[
            pl.BlockSpec((TM, K), lambda i: (i, 0)),   # streamed patch rows
            pl.BlockSpec((K, E), lambda i: (0, 0)),    # resident weight
            pl.BlockSpec((3, E), lambda i: (0, 0)),    # resident bias/ln params
        ],
        out_specs=pl.BlockSpec((TM, E), lambda i: (i, 0)),
        compiler_params=pltpu.CompilerParams(
            dimension_semantics=("parallel",),         # shard rows across v7x TCs
            vmem_limit_bytes=32 * 1024 * 1024),
    )(patches, w_mat, vecs)

    return out.reshape(Bb, N, E), Ho, Wo


# --------------------------- pure-JAX reference --------------------------------
def reference(x, w_conv, b_conv, gamma, beta, *, patch_size=7, stride=4):
    P, S = patch_size, stride
    pad = P // 2
    y = lax.conv_general_dilated(
        x, w_conv, window_strides=(S, S), padding=((pad, pad), (pad, pad)),
        dimension_numbers=("NCHW", "OIHW", "NCHW"),
        precision=lax.Precision.HIGHEST)
    Bb, E, Ho, Wo = y.shape
    y = y + b_conv[None, :, None, None]
    y = y.reshape(Bb, E, Ho * Wo).transpose(0, 2, 1)                # (B, N, E)
    mu = jnp.mean(y, axis=-1, keepdims=True)
    var = jnp.mean((y - mu) ** 2, axis=-1, keepdims=True)
    y = (y - mu) * lax.rsqrt(var + LN_EPS) * gamma + beta
    return y, Ho, Wo


# --------------------------------- main ----------------------------------------
if __name__ == "__main__":
    B, Cin, H, W = 2, 3, 16, 16
    E, P, S = 32, 7, 4

    key = jax.random.PRNGKey(0)
    k0, k1, k2, k3, k4 = jax.random.split(key, 5)
    x = jax.random.normal(k0, (B, Cin, H, W), jnp.float32)

    fan_out = P * P * E
    w_conv = jax.random.normal(k1, (E, Cin, P, P), jnp.float32) * math.sqrt(2.0 / fan_out)
    b_conv = 0.02 * jax.random.normal(k2, (E,), jnp.float32)
    gamma = 1.0 + 0.05 * jax.random.normal(k3, (E,), jnp.float32)
    beta = 0.05 * jax.random.normal(k4, (E,), jnp.float32)

    out, Ho, Wo = overlap_patch_embed(x, w_conv, b_conv, gamma, beta,
                                      patch_size=P, stride=S)
    out = jax.block_until_ready(out)

    ref, Ho_r, Wo_r = reference(x, w_conv, b_conv, gamma, beta,
                                patch_size=P, stride=S)
    ref = jax.block_until_ready(ref)

    assert (Ho, Wo) == (Ho_r, Wo_r)
    # Tolerance reflects bf16 rounding of the conv operands (accumulation,
    # bias and LayerNorm remain f32).
    np.testing.assert_allclose(np.asarray(out), np.asarray(ref), rtol=3e-2, atol=3e-2)
    print("KERNEL_OK")
</pallas_src>

<mosaic_0001>
module attributes {stable_mosaic.version = 11 : i64} {
  func.func @patch_embed_kernel(%arg0: i32, %arg1: memref<32x147xbf16, #tpu.memory_space<vmem>>, %arg2: memref<147x32xbf16, #tpu.memory_space<vmem>>, %arg3: memref<3x32xf32, #tpu.memory_space<vmem>>, %arg4: memref<32x32xf32, #tpu.memory_space<vmem>>) attributes {dimension_semantics = [#tpu.dimension_semantics<parallel>], iteration_bounds = array<i64: 1>, scalar_prefetch = 0 : i64, scratch_operands = 0 : i64, tpu.core_type = #tpu.core_type<tc>, window_params = [{transform_indices = @transform_0, window_bounds = array<i64: 32, 147>}, {pipeline_mode = #tpu.pipeline_mode<synchronous>, transform_indices = @transform_1, window_bounds = array<i64: 147, 32>}, {pipeline_mode = #tpu.pipeline_mode<synchronous>, transform_indices = @transform_2, window_bounds = array<i64: 3, 32>}, {transform_indices = @transform_3, window_bounds = array<i64: 32, 32>}]} {
    %c0 = arith.constant 0 : index
    %c0_0 = arith.constant 0 : index
    %0 = vector.load %arg1[%c0, %c0_0] : memref<32x147xbf16, #tpu.memory_space<vmem>>, vector<32x147xbf16>
    %c0_1 = arith.constant 0 : index
    %c0_2 = arith.constant 0 : index
    %1 = vector.load %arg2[%c0_1, %c0_2] : memref<147x32xbf16, #tpu.memory_space<vmem>>, vector<147x32xbf16>
    %c0_3 = arith.constant 0 : index
    %c0_4 = arith.constant 0 : index
    %2 = vector.load %arg3[%c0_3, %c0_4] : memref<3x32xf32, #tpu.memory_space<vmem>>, vector<1x32xf32>
    %c1 = arith.constant 1 : index
    %c0_5 = arith.constant 0 : index
    %3 = vector.load %arg3[%c1, %c0_5] : memref<3x32xf32, #tpu.memory_space<vmem>>, vector<1x32xf32>
    %c2 = arith.constant 2 : index
    %c0_6 = arith.constant 0 : index
    %4 = vector.load %arg3[%c2, %c0_6] : memref<3x32xf32, #tpu.memory_space<vmem>>, vector<1x32xf32>
    %cst = arith.constant dense<0.000000e+00> : vector<32x32xf32>
    %5 = tpu.matmul %0, %1, %cst {dimension_numbers = #tpu.dot_dimension_numbers<[1], [0], [0], [1], [0, 0, 1, 1], [], []>} : vector<32x147xbf16>, vector<147x32xbf16>, vector<32x32xf32> -> vector<32x32xf32>
    %6 = vector.broadcast %2 : vector<1x32xf32> to vector<32x32xf32>
    %7 = arith.addf %5, %6 : vector<32x32xf32>
    %cst_7 = arith.constant dense<0.000000e+00> : vector<32xf32>
    %8 = vector.multi_reduction <add>, %7, %cst_7 [1] : vector<32x32xf32> to vector<32xf32>
    %9 = vector.shape_cast %8 : vector<32xf32> to vector<32x1xf32>
    %cst_8 = arith.constant 3.200000e+01 : f32
    %10 = vector.broadcast %cst_8 : f32 to vector<32x1xf32>
    %11 = arith.divf %9, %10 : vector<32x1xf32>
    %12 = vector.broadcast %11 : vector<32x1xf32> to vector<32x32xf32>
    %13 = arith.subf %7, %12 : vector<32x32xf32>
    %14 = arith.mulf %13, %13 : vector<32x32xf32>
    %cst_9 = arith.constant dense<0.000000e+00> : vector<32xf32>
    %15 = vector.multi_reduction <add>, %14, %cst_9 [1] : vector<32x32xf32> to vector<32xf32>
    %16 = vector.shape_cast %15 : vector<32xf32> to vector<32x1xf32>
    %cst_10 = arith.constant 3.200000e+01 : f32
    %17 = vector.broadcast %cst_10 : f32 to vector<32x1xf32>
    %18 = arith.divf %16, %17 : vector<32x1xf32>
    %19 = vector.broadcast %11 : vector<32x1xf32> to vector<32x32xf32>
    %20 = arith.subf %7, %19 : vector<32x32xf32>
    %cst_11 = arith.constant 9.99999974E-6 : f32
    %21 = vector.broadcast %cst_11 : f32 to vector<32x1xf32>
    %22 = arith.addf %18, %21 : vector<32x1xf32>
    %23 = math.rsqrt %22 : vector<32x1xf32>
    %24 = vector.broadcast %23 : vector<32x1xf32> to vector<32x32xf32>
    %25 = arith.mulf %20, %24 : vector<32x32xf32>
    %26 = vector.broadcast %3 : vector<1x32xf32> to vector<32x32xf32>
    %27 = arith.mulf %25, %26 : vector<32x32xf32>
    %28 = vector.broadcast %4 : vector<1x32xf32> to vector<32x32xf32>
    %29 = arith.addf %27, %28 : vector<32x32xf32>
    %c0_12 = arith.constant 0 : index
    %c0_13 = arith.constant 0 : index
    %30 = vector.load %arg4[%c0_12, %c0_13] : memref<32x32xf32, #tpu.memory_space<vmem>>, vector<32x32xf32>
    tpu.vector_store %arg4[%c0_12, %c0_13], %29 {strides = array<i32>} : memref<32x32xf32, #tpu.memory_space<vmem>>, vector<32x32xf32>,
    return
  }
  func.func @transform_0(%arg0: i32) -> (i32, i32) {
    %c0_i32 = arith.constant 0 : i32
    %c0_i32_0 = arith.constant 0 : i32
    return %arg0, %c0_i32 : i32, i32
  }
  func.func @transform_1(%arg0: i32) -> (i32, i32) {
    %c0_i32 = arith.constant 0 : i32
    %c0_i32_0 = arith.constant 0 : i32
    %c0_i32_1 = arith.constant 0 : i32
    return %c0_i32, %c0_i32_0 : i32, i32
  }
  func.func @transform_2(%arg0: i32) -> (i32, i32) {
    %c0_i32 = arith.constant 0 : i32
    %c0_i32_0 = arith.constant 0 : i32
    %c0_i32_1 = arith.constant 0 : i32
    return %c0_i32, %c0_i32_0 : i32, i32
  }
  func.func @transform_3(%arg0: i32) -> (i32, i32) {
    %c0_i32 = arith.constant 0 : i32
    %c0_i32_0 = arith.constant 0 : i32
    return %arg0, %c0_i32 : i32, i32
  }
}

</mosaic_0001>

<llo_original>
// kernel: tpu_custom_call.1
$region0: #{tpu_custom_call.1}
  #allocation0 [shape = 'u32[]', space=smem, size = 0x4, offset = 0x4, fixed_abs, tag = 'smem constant byte address 0x4 - core index']
  #allocation1 [shape = 'u32[72,128]{1,0:T(1,128)}', space=vmem, size = 0x9000, scoped, tag = 'internal scratch']
  %s0 = inlined_call_operand.vmem [shape: bf16[32,147], index: 0, kind: input, shape index: {}]
  %s1 = inlined_call_operand.vmem [shape: bf16[147,32], index: 1, kind: input, shape index: {}]
  %s2 = inlined_call_operand.vmem [shape: f32[3,32], index: 2, kind: input, shape index: {}]
  %s3 = inlined_call_operand.hbm [shape: f32[32,32], index: 3, kind: output, shape index: {}]
  %s4 = sld [smem:[#allocation0]]
  $region22: #{tpu_custom_call.1} parent=0
    _
  %s6 = ssub.s32 1, %s4
  %s7 = scalar_select 0, %s6, %s4
  $region1: #{tpu_custom_call.1} parent=0
    #allocation2 [shape = 'u8[16384]{0}', space=vmem, size = 0x4000, scoped, tag = 'output window, operand 0, single buffered']
    #allocation3 [shape = 's32[1]{0}', space=sflag, size = 0x4, scoped, tag = 'scoped memory for tpu_custom_call.1']
    %8 = vsyncpa [#allocation3], 0
    // Predicated region
    $region2: #{tpu_custom_call.1} parent=1 // pred_check
      _
    $region3: #{tpu_custom_call.1} parent=1 // pred_check_branch
      %10 = sbr.rel (0) target = $region5
    $region4: #{tpu_custom_call.1} parent=1 // pred_region
      _
    $region5: #{tpu_custom_call.1} parent=1 // pred_fallthru
      _
    // Predicated region
    $region6: #{tpu_custom_call.1} parent=1 // pred_check
      _
    $region7: #{tpu_custom_call.1} parent=1 // pred_check_branch
      %12 = sbr.rel (0) target = $region9
    $region8: #{tpu_custom_call.1} parent=1 // pred_region
      _
    $region9: #{tpu_custom_call.1} parent=1 // pred_fallthru
      _
    // Predicated region
    $region10: #{tpu_custom_call.1} parent=1 // pred_check
      _
    $region11: #{tpu_custom_call.1} parent=1 // pred_check_branch
      %14 = sbr.rel (0) target = $region13
    $region12: #{tpu_custom_call.1} parent=1 // pred_region
      _
    $region13: #{tpu_custom_call.1} parent=1 // pred_fallthru
      _
    %v16 = vld [vmem:[%s0] sm:$0xff]
    %v17 = vld [vmem:[%s0 + $0x8] sm:$0xff]
    %v18 = vld [vmem:[%s0 + $0x10] sm:$0xff]
    %v19 = vld [vmem:[%s0 + $0x18] sm:$0xff]
    %v20 = vld [vmem:[%s1] sm:$0xf]
    %v21 = vld [vmem:[%s1 + $0x4] sm:$0xf]
    %v22 = vld [vmem:[%s1 + $0x8] sm:$0xf]
    %v23 = vld [vmem:[%s1 + $0xc] sm:$0xf]
    %v24 = vld [vmem:[%s1 + $0x10] sm:$0xf]
    %v25 = vld [vmem:[%s1 + $0x14] sm:$0xf]
    %v26 = vld [vmem:[%s1 + $0x18] sm:$0xf]
    %v27 = vld [vmem:[%s1 + $0x1c] sm:$0xf]
    %v28 = vld [vmem:[%s1 + $0x20] sm:$0xf]
    %v29 = vld [vmem:[%s1 + $0x24] sm:$0xf]
    %v30 = vld [vmem:[%s1 + $0x28] sm:$0xf]
    %v31 = vld [vmem:[%s1 + $0x2c] sm:$0xf]
    %v32 = vld [vmem:[%s1 + $0x30] sm:$0xf]
    %v33 = vld [vmem:[%s1 + $0x34] sm:$0xf]
    %v34 = vld [vmem:[%s1 + $0x38] sm:$0xf]
    %v35 = vld [vmem:[%s1 + $0x3c] sm:$0xf]
    %v36 = vld [vmem:[%s1 + $0x40] sm:$0xf]
    %v37 = vld [vmem:[%s1 + $0x44] sm:$0xf]
    %v38 = vld [vmem:[%s1 + $0x48] sm:$0x3]
    %v39 = vld [vmem:[%s2] sm:$0x1]
    %v40 = vld [vmem:[%s2 + $0x1] sm:$0x1]
    %v41 = vld [vmem:[%s2 + $0x2] sm:$0x1]
    %v42 = vperm.slane %v39, 0
    %v47 = vunpack.c.l.b16 %v16
    %v48 = vunpack.c.h.b16 %v16
    %v49 = vunpack.c.l.b16 %v17
    %v50 = vunpack.c.h.b16 %v17
    %v51 = vunpack.c.l.b16 %v18
    %v52 = vunpack.c.h.b16 %v18
    %v53 = vunpack.c.l.b16 %v19
    %v54 = vunpack.c.h.b16 %v19
    %v55 = vpack.c.b16 %v49, %v47
    %v56 = vpack.c.b16 %v50, %v48
    %v57 = vpack.c.b16 %v53, %v51
    %v58 = vpack.c.b16 %v54, %v52
    %v80 = vunpack.c.l.b16 %v20
    %v81 = vunpack.c.l.b16 %v21
    %v82 = vunpack.c.l.b16 %v22
    %v83 = vunpack.c.l.b16 %v23
    %v84 = vunpack.c.l.b16 %v24
    %v85 = vunpack.c.l.b16 %v25
    %v86 = vunpack.c.l.b16 %v26
    %v87 = vunpack.c.l.b16 %v27
    %v88 = vunpack.c.l.b16 %v28
    %v89 = vunpack.c.l.b16 %v29
    %v90 = vunpack.c.l.b16 %v30
    %v91 = vunpack.c.l.b16 %v31
    %v92 = vunpack.c.l.b16 %v32
    %v93 = vunpack.c.l.b16 %v33
    %v94 = vunpack.c.l.b16 %v34
    %v95 = vunpack.c.l.b16 %v35
    %v96 = vunpack.c.l.b16 %v36
    %v97 = vunpack.c.l.b16 %v37
    %v98 = vunpack.c.l.b16 %v38
    %v99 = vpack.c.b16 %v81, %v80
    %v100 = vpack.c.b16 %v83, %v82
    %v101 = vpack.c.b16 %v85, %v84
    %v102 = vpack.c.b16 %v87, %v86
    %v103 = vpack.c.b16 %v89, %v88
    %v104 = vpack.c.b16 %v91, %v90
    %v105 = vpack.c.b16 %v93, %v92
    %v106 = vpack.c.b16 %v95, %v94
    %v107 = vpack.c.b16 %v97, %v96
    %v108 = vpack.c.b16 %v98, %v98
    %vm118 = vcmask 154624
    %v120 = vsel %vm118, %v56, 0
    %v123 = vsel %vm118, %v58, 0
    %vm125 = vcmask 1040384
    %vm126 = vcmask 1041408
    %v127 = vsel %vm125, 4294967295, 65535
    %v128 = vsel %vm126, %v127, 0
    %v130 = vand.u32 %v108, %v128
    %132 = vmatpush.bf16.msra.mxu0 %v106
    %133 = vmatpush.bf16.msra.mxu0 %v105
    %134 = vmatpush.bf16.msra.mxu0 %v104
    %135 = vmatpush.bf16.msra.mxu0 %v103
    %136 = vmatpush.bf16.msra.mxu0 %v102
    %137 = vmatpush.bf16.msra.mxu0 %v101
    %138 = vmatpush.bf16.msra.mxu0 %v100
    %139 = vmatpush.bf16.msra.mxu0 %v99
    %140 = vmatmul.bf16.gmra.mxu0 %v55
    %v141 = vpop.f32.mrf.mxu0
    %v142 = vadd.f32 %v42, %v141
    %v143 = vpop.f32.mrf.mxu0
    %v144 = vadd.f32 %v42, %v143
    %145 = vmatmul.bf16.gmra.mxu0 %v57
    %v146 = vpop.f32.mrf.mxu0
    %v147 = vadd.f32 %v42, %v146
    %v148 = vpop.f32.mrf.mxu0
    %v149 = vadd.f32 %v42, %v148
    %150 = vdwg.mxu0
    %151 = vmatpush.bf16.msra.mxu0 0
    %152 = vmatpush.bf16.msra.mxu0 0
    %153 = vmatpush.bf16.msra.mxu0 0
    %154 = vmatpush.bf16.msra.mxu0 0
    %155 = vmatpush.bf16.msra.mxu0 0
    %156 = vmatpush.bf16.msra.mxu0 0
    %157 = vmatpush.bf16.msra.mxu0 %v130
    %158 = vmatpush.bf16.msra.mxu0 %v107
    %159 = vmatmul.bf16.gmra.mxu0 %v120
    %v160 = vpop.f32.mrf.mxu0
    %v161 = vadd.f32 %v142, %v160
    %v162 = vpop.f32.mrf.mxu0
    %v163 = vadd.f32 %v144, %v162
    %164 = vmatmul.bf16.gmra.mxu0 %v123
    %v165 = vpop.f32.mrf.mxu0
    %v166 = vadd.f32 %v147, %v165
    %v167 = vpop.f32.mrf.mxu0
    %v168 = vadd.f32 %v149, %v167
    %169 = vdwg.mxu0
    %vm170 = vcmask 261120
    %v171 = vsel %vm170, %v161, 0.0
    %172 = vadd.xlane.f32.xlu0 %v171
    %v173 = vpop.xlane.xlu0 %172
    %v174 = vsel %vm170, %v163, 0.0
    %175 = vadd.xlane.f32.xlu0 %v174
    %v176 = vpop.xlane.xlu0 %175
    %v177 = vsel %vm170, %v166, 0.0
    %178 = vadd.xlane.f32.xlu0 %v177
    %v179 = vpop.xlane.xlu0 %178
    %v180 = vsel %vm170, %v168, 0.0
    %181 = vadd.xlane.f32.xlu0 %v180
    %v182 = vpop.xlane.xlu0 %181
    %v183 = vrcp.pop 32.0
    %v184 = vmul.f32 32.0, %v183
    %v185 = vsub.f32 1.0, %v184
    %v186 = vmul.f32 %v183, %v185
    %v187 = vadd.f32 %v183, %v186
    %vm188 = vweird.f32 %v183
    %v189 = vsel %vm188, %v183, %v187
    %v190 = vmul.f32 %v173, %v189
    %v191 = vmul.f32 %v176, %v189
    %v192 = vmul.f32 %v179, %v189
    %v193 = vmul.f32 %v182, %v189
    %v194 = vsub.f32 %v161, %v190
    %v195 = vsub.f32 %v163, %v191
    %v196 = vsub.f32 %v166, %v192
    %v197 = vsub.f32 %v168, %v193
    %v198 = vmul.f32 %v194, %v194
    %v199 = vmul.f32 %v195, %v195
    %v200 = vmul.f32 %v196, %v196
    %v201 = vmul.f32 %v197, %v197
    %v202 = vsel %vm170, %v198, 0.0
    %203 = vadd.xlane.f32.xlu0 %v202
    %v204 = vpop.xlane.xlu0 %203
    %v205 = vsel %vm170, %v199, 0.0
    %206 = vadd.xlane.f32.xlu0 %v205
    %v207 = vpop.xlane.xlu0 %206
    %v208 = vsel %vm170, %v200, 0.0
    %209 = vadd.xlane.f32.xlu0 %v208
    %v210 = vpop.xlane.xlu0 %209
    %v211 = vsel %vm170, %v201, 0.0
    %212 = vadd.xlane.f32.xlu0 %v211
    %v213 = vpop.xlane.xlu0 %212
    %v214 = vmul.f32 %v204, %v189
    %v215 = vmul.f32 %v207, %v189
    %v216 = vmul.f32 %v210, %v189
    %v217 = vmul.f32 %v213, %v189
    %v218 = vadd.f32 %v214, 1e-05
    %v219 = vadd.f32 %v215, 1e-05
    %v220 = vadd.f32 %v216, 1e-05
    %v221 = vadd.f32 %v217, 1e-05
    %v222 = vrsqrt.pop %v218
    %v223 = vmul.f32 %v222, %v218
    %v224 = vmul.f32 %v223, %v222
    %v225 = vmul.f32 0.5, %v224
    %v226 = vsub.f32 1.5, %v225
    %v227 = vmul.f32 %v222, %v226
    %vm228 = vweird.f32 %v218
    %vm229 = vweird.f32 %v222
    %vm230 = vmor %vm228, %vm229
    %v231 = vsel %vm230, %v222, %v227
    %v232 = vrsqrt.pop %v219
    %v233 = vmul.f32 %v232, %v219
    %v234 = vmul.f32 %v233, %v232
    %v235 = vmul.f32 0.5, %v234
    %v236 = vsub.f32 1.5, %v235
    %v237 = vmul.f32 %v232, %v236
    %vm238 = vweird.f32 %v219
    %vm239 = vweird.f32 %v232
    %vm240 = vmor %vm238, %vm239
    %v241 = vsel %vm240, %v232, %v237
    %v242 = vrsqrt.pop %v220
    %v243 = vmul.f32 %v242, %v220
    %v244 = vmul.f32 %v243, %v242
    %v245 = vmul.f32 0.5, %v244
    %v246 = vsub.f32 1.5, %v245
    %v247 = vmul.f32 %v242, %v246
    %vm248 = vweird.f32 %v220
    %vm249 = vweird.f32 %v242
    %vm250 = vmor %vm248, %vm249
    %v251 = vsel %vm250, %v242, %v247
    %v252 = vrsqrt.pop %v221
    %v253 = vmul.f32 %v252, %v221
    %v254 = vmul.f32 %v253, %v252
    %v255 = vmul.f32 0.5, %v254
    %v256 = vsub.f32 1.5, %v255
    %v257 = vmul.f32 %v252, %v256
    %vm258 = vweird.f32 %v221
    %vm259 = vweird.f32 %v252
    %vm260 = vmor %vm258, %vm259
    %v261 = vsel %vm260, %v252, %v257
    %v262 = vmul.f32 %v194, %v231
    %v263 = vmul.f32 %v195, %v241
    %v264 = vmul.f32 %v196, %v251
    %v265 = vmul.f32 %v197, %v261
    %v266 = vperm.slane %v40, 0
    %v267 = vmul.f32 %v262, %v266
    %v268 = vmul.f32 %v263, %v266
    %v269 = vmul.f32 %v264, %v266
    %v270 = vmul.f32 %v265, %v266
    %v271 = vperm.slane %v41, 0
    %v272 = vadd.f32 %v267, %v271
    %v273 = vadd.f32 %v268, %v271
    %v274 = vadd.f32 %v269, %v271
    %v275 = vadd.f32 %v270, %v271
    %276 = vst.msk [vmem:[#allocation2] sm:$0xff] %vm170, %v272
    %277 = vst.msk [vmem:[#allocation2 + $0x8] sm:$0xff] %vm170, %v273
    %278 = vst.msk [vmem:[#allocation2 + $0x10] sm:$0xff] %vm170, %v274
    %279 = vst.msk [vmem:[#allocation2 + $0x18] sm:$0xff] %vm170, %v275
    // Predicated region
    $region14: #{tpu_custom_call.1} parent=1 // pred_check
      _
    $region15: #{tpu_custom_call.1} parent=1 // pred_check_branch
      %281 = sbr.rel (0) target = $region17
    $region16: #{tpu_custom_call.1} parent=1 // pred_region
      %283 = vsyncadd [#allocation3], 0
      %s284 = sshll.u32 [#allocation2], 4
      %s285 = int_to_ptr.vmem [resolvable:$true] %s284
      %s286 = sshll.u32 %s3, 4
      %s287 = int_to_ptr.hbm [resolvable:$true] %s286
      %292 = dma.vmem_to_hbm [thread:$0]  %s285, 512, %s287, [#allocation3], 128, 128, 8
    $region17: #{tpu_custom_call.1} parent=1 // pred_fallthru
      _
    // Predicated region
    $region18: #{tpu_custom_call.1} parent=1 // pred_check
      _
    $region19: #{tpu_custom_call.1} parent=1 // pred_check_branch
      %294 = sbr.rel (0) target = $region21
    $region20: #{tpu_custom_call.1} parent=1 // pred_region
      %296 = dma.done [#allocation3], 512
    $region21: #{tpu_custom_call.1} parent=1 // pred_fallthru
      _
    %297 = vsyncpa [#allocation3], 1

</llo_original>
